<compile_context>
chip_gen: v7x
topology: tpu7x:2x2x1
jax: 0.10.0
libtpu: 0.0.40
codegen_flags: <defaults>
</compile_context>

<pallas_src>
import numpy as np
import jax
import jax.numpy as jnp
from jax.experimental import pallas as pl
from jax.experimental.pallas import tpu as pltpu


# ---------------------------------------------------------------------------
# Positional table (host-side numpy, same math as the PyTorch registered buffer)
# ---------------------------------------------------------------------------
def make_sinusoid_table(n_position: int, d_hid: int) -> jnp.ndarray:
    pos = np.arange(n_position, dtype=np.float64)[:, None]          # (P, 1)
    hid = np.arange(d_hid, dtype=np.int64)[None, :]                 # (1, D)
    angle = pos / np.power(10000.0, 2 * (hid // 2) / d_hid)         # (P, D)
    table = np.empty_like(angle)
    table[:, 0::2] = np.sin(angle[:, 0::2])
    table[:, 1::2] = np.cos(angle[:, 1::2])
    return jnp.asarray(table, dtype=jnp.float32)


# ---------------------------------------------------------------------------
# Kernels
# ---------------------------------------------------------------------------
def _add_rowbcast_kernel(x_ref, pos_ref, o_ref):
    # x_ref: (bm, bn) native dtype; pos_ref: (1, bn); o_ref: (bm, bn) out dtype.
    x = x_ref[...].astype(jnp.float32)
    p = pos_ref[...].astype(jnp.float32)          # broadcasts over rows
    o_ref[...] = (x + p).astype(o_ref.dtype)


def _add_pos3d_kernel(x_ref, pos_ref, o_ref):
    # x_ref: (kb, bs, bd); pos_ref: (bs, bd); o_ref: (kb, bs, bd).
    x = x_ref[...].astype(jnp.float32)
    p = pos_ref[...].astype(jnp.float32)[None, :, :]   # broadcast over batch
    o_ref[...] = (x + p).astype(o_ref.dtype)


# ---------------------------------------------------------------------------
# Tiling policy
# ---------------------------------------------------------------------------
_LANE = 128
_SUBLANE = 8
_MAX_BLOCK_ELEMS = 1 << 20          # ~4 MiB of f32 per block per stream
_FLAT_MAX_ROW = 32768               # max flattened (S*D) lane width for flat layout
_VMEM_LIMIT = 40 * 1024 * 1024      # < v7x 64 MiB physical VMEM, generous elsewhere
_MIN_PALLAS_BYTES = 256 * 1024      # below this, let XLA fuse the add


def _round_down(x: int, m: int) -> int:
    return (x // m) * m


def _flat_call(x, pos_table, out_dtype):
    """x viewed as (B, S*D): lane-dense rows, pos is a single broadcast row."""
    B, S, D = x.shape
    N = S * D
    n_position = pos_table.shape[0]

    x2 = x.reshape(B, N)
    if N % _LANE == 0 or N == n_position * D:
        # No per-call slice: the first S*D lanes of the flattened table are
        # exactly pos_table[:S].
        pos2 = pos_table.reshape(1, n_position * D)
    else:
        pos2 = pos_table[:S, :].reshape(1, N)

    if B < _SUBLANE:
        bm = B                                    # full extent (tiny batch)
    else:
        cap = max(_SUBLANE, _MAX_BLOCK_ELEMS // N)
        bm = max(_SUBLANE, _round_down(min(B, cap), _SUBLANE))
        # keep >= 2 row blocks when possible so both v7x TensorCores get work
        if pl.cdiv(B, bm) < 2 and B >= 2 * _SUBLANE:
            bm = max(_SUBLANE, _round_down(B // 2, _SUBLANE))

    grid = (pl.cdiv(B, bm),)                      # ragged last block is masked

    out2 = pl.pallas_call(
        _add_rowbcast_kernel,
        out_shape=jax.ShapeDtypeStruct((B, N), out_dtype),
        grid_spec=pltpu.PrefetchScalarGridSpec(
            num_scalar_prefetch=0,
            grid=grid,
            in_specs=[
                pl.BlockSpec((bm, N), lambda i: (i, 0)),    # x rows
                pl.BlockSpec((1, N), lambda i: (0, 0)),     # pos row (resident)
            ],
            out_specs=pl.BlockSpec((bm, N), lambda i: (i, 0)),
        ),
        compiler_params=pltpu.CompilerParams(
            dimension_semantics=("parallel",),
            vmem_limit_bytes=_VMEM_LIMIT,
        ),
    )(x2, pos2)
    return out2.reshape(B, S, D)


def _call_3d(x, pos_table, out_dtype):
    """3-D blocks (kb, bs, bd): sublanes from the sequence axis, lanes from D."""
    B, S, D = x.shape

    # lane tile over the hidden axis
    if D % _LANE == 0:
        bd = min(D, 4096)
    else:
        bd = D                                    # full extent (masked tail)

    # sublane tile over the sequence axis
    if S >= _SUBLANE:
        cap = max(_SUBLANE, _MAX_BLOCK_ELEMS // bd)
        bs = max(_SUBLANE, _round_down(min(S, 512, cap), _SUBLANE))
    else:
        bs = S                                    # full extent (S < 8)

    # fuse batch items into one block via the (unconstrained) leading dim
    kb = max(1, min(B, _MAX_BLOCK_ELEMS // (bs * bd)))

    grid = (pl.cdiv(B, kb), pl.cdiv(S, bs), pl.cdiv(D, bd))
    if grid[0] * grid[1] * grid[2] == 1:          # give v7x's 2nd core some work
        if B >= 2:
            kb = max(1, B // 2)
        elif S >= 2 * _SUBLANE:
            bs = max(_SUBLANE, _round_down(bs // 2, _SUBLANE))
        grid = (pl.cdiv(B, kb), pl.cdiv(S, bs), pl.cdiv(D, bd))

    # Pass the whole table (no per-call slice) when the row tile is 8-aligned;
    # only slice for the S < 8 corner case so the block equals the full extent.
    pos_in = pos_table if bs % _SUBLANE == 0 else pos_table[:S, :]

    return pl.pallas_call(
        _add_pos3d_kernel,
        out_shape=jax.ShapeDtypeStruct((B, S, D), out_dtype),
        grid_spec=pltpu.PrefetchScalarGridSpec(
            num_scalar_prefetch=0,
            grid=grid,
            in_specs=[
                pl.BlockSpec((kb, bs, bd), lambda b, s, d: (b, s, d)),   # x
                pl.BlockSpec((bs, bd), lambda b, s, d: (s, d)),          # pos
            ],
            out_specs=pl.BlockSpec((kb, bs, bd), lambda b, s, d: (b, s, d)),
        ),
        compiler_params=pltpu.CompilerParams(
            dimension_semantics=("parallel", "parallel", "parallel"),
            vmem_limit_bytes=_VMEM_LIMIT,
        ),
    )(x, pos_in)


# ---------------------------------------------------------------------------
# Public wrapper (== PositionalEncoding.forward)
# ---------------------------------------------------------------------------
def positional_encoding(x, pos_table, *, out_dtype=None,
                        min_pallas_bytes=_MIN_PALLAS_BYTES):
    """x: (B, S, D); pos_table: (n_position, D). Returns x + pos_table[None, :S, :]."""
    B, S, D = x.shape
    n_position, d_tab = pos_table.shape
    if d_tab != D:
        raise ValueError(f"hidden dim mismatch: x has {D}, pos_table has {d_tab}")
    if S > n_position:
        raise ValueError(f"sequence length {S} exceeds positional table size {n_position}")

    if out_dtype is None:
        # matches torch promotion (f32 table + any float x -> f32)
        out_dtype = jnp.result_type(x.dtype, pos_table.dtype)
    out_dtype = jnp.dtype(out_dtype)

    # Tiny inputs: a single-step pallas_call is pure fixed overhead -> let XLA fuse.
    if x.size * x.dtype.itemsize < min_pallas_bytes:
        pos = pos_table[:S, :].astype(jnp.float32)
        return (x.astype(jnp.float32) + pos[None, :, :]).astype(out_dtype)

    if S * D <= _FLAT_MAX_ROW:
        return _flat_call(x, pos_table, out_dtype)
    return _call_3d(x, pos_table, out_dtype)


# ---------------------------------------------------------------------------
# Demo / self-check
# ---------------------------------------------------------------------------
if __name__ == "__main__":
    key = jax.random.PRNGKey(0)
    k1, k2, k3 = jax.random.split(key, 3)

    # --- Test 1: module demo shape (batch=2, seq=8, hidden=32) -> flat layout ---
    d_hid, n_position = 32, 200
    pos_table = make_sinusoid_table(n_position, d_hid)
    B, S, D = 2, 8, d_hid
    x = jax.random.normal(k1, (B, S, D), dtype=jnp.float32)

    out = positional_encoding(x, pos_table, min_pallas_bytes=0)   # force Pallas
    out = jax.block_until_ready(out)
    ref = x + pos_table[None, :S, :]
    assert out.shape == (B, S, D) and out.dtype == jnp.float32
    assert jnp.allclose(out, ref, atol=1e-6, rtol=1e-6), "flat-layout mismatch"

    # default path (XLA fast path at this size) must agree as well
    out_fast = jax.block_until_ready(positional_encoding(x, pos_table))
    assert jnp.allclose(out_fast, ref, atol=1e-6, rtol=1e-6), "fast-path mismatch"

    # --- Test 2: flat layout, ragged row blocks, non-128 row width, bf16 in ---
    d2, n2 = 24, 64
    pt2 = make_sinusoid_table(n2, d2)
    B2, S2 = 20, 7
    x2 = jax.random.normal(k2, (B2, S2, d2), dtype=jnp.bfloat16)
    out2 = jax.block_until_ready(positional_encoding(x2, pt2, min_pallas_bytes=0))
    ref2 = x2.astype(jnp.float32) + pt2[None, :S2, :]
    assert out2.shape == (B2, S2, d2) and out2.dtype == jnp.float32
    assert jnp.allclose(out2, ref2, atol=1e-5, rtol=1e-5), "ragged flat mismatch"

    # --- Test 3: 3-D layout (large S*D), batch split across blocks ---
    d3, n3 = 2064, 32
    pt3 = make_sinusoid_table(n3, d3)
    B3, S3 = 2, 16
    x3 = jax.random.normal(k3, (B3, S3, d3), dtype=jnp.float32)
    out3 = jax.block_until_ready(positional_encoding(x3, pt3, min_pallas_bytes=0))
    ref3 = x3 + pt3[None, :S3, :]
    assert out3.shape == (B3, S3, d3) and out3.dtype == jnp.float32
    assert jnp.allclose(out3, ref3, atol=1e-5, rtol=1e-5), "3D-layout mismatch"

    print("KERNEL_OK")
</pallas_src>

<mosaic_0001>
module attributes {stable_mosaic.version = 11 : i64} {
  func.func @_add_rowbcast_kernel(%arg0: i32, %arg1: memref<2x256xf32, #tpu.memory_space<vmem>>, %arg2: memref<1x256xf32, #tpu.memory_space<vmem>>, %arg3: memref<2x256xf32, #tpu.memory_space<vmem>>) attributes {dimension_semantics = [#tpu.dimension_semantics<parallel>], iteration_bounds = array<i64: 1>, scalar_prefetch = 0 : i64, scratch_operands = 0 : i64, tpu.core_type = #tpu.core_type<tc>, window_params = [{transform_indices = @transform_0, window_bounds = array<i64: 2, 256>}, {transform_indices = @transform_1, window_bounds = array<i64: 1, 256>}, {transform_indices = @transform_2, window_bounds = array<i64: 2, 256>}]} {
    %c0 = arith.constant 0 : index
    %c0_0 = arith.constant 0 : index
    %0 = vector.load %arg1[%c0, %c0_0] : memref<2x256xf32, #tpu.memory_space<vmem>>, vector<2x256xf32>
    %c0_1 = arith.constant 0 : index
    %c0_2 = arith.constant 0 : index
    %1 = vector.load %arg2[%c0_1, %c0_2] : memref<1x256xf32, #tpu.memory_space<vmem>>, vector<1x256xf32>
    %2 = vector.broadcast %1 : vector<1x256xf32> to vector<2x256xf32>
    %3 = arith.addf %0, %2 : vector<2x256xf32>
    %c0_3 = arith.constant 0 : index
    %c0_4 = arith.constant 0 : index
    %4 = vector.load %arg3[%c0_3, %c0_4] : memref<2x256xf32, #tpu.memory_space<vmem>>, vector<2x256xf32>
    tpu.vector_store %arg3[%c0_3, %c0_4], %3 {strides = array<i32>} : memref<2x256xf32, #tpu.memory_space<vmem>>, vector<2x256xf32>,
    return
  }
  func.func @transform_0(%arg0: i32) -> (i32, i32) {
    %c0_i32 = arith.constant 0 : i32
    %c0_i32_0 = arith.constant 0 : i32
    return %arg0, %c0_i32 : i32, i32
  }
  func.func @transform_1(%arg0: i32) -> (i32, i32) {
    %c0_i32 = arith.constant 0 : i32
    %c0_i32_0 = arith.constant 0 : i32
    %c0_i32_1 = arith.constant 0 : i32
    return %c0_i32, %c0_i32_0 : i32, i32
  }
  func.func @transform_2(%arg0: i32) -> (i32, i32) {
    %c0_i32 = arith.constant 0 : i32
    %c0_i32_0 = arith.constant 0 : i32
    return %arg0, %c0_i32 : i32, i32
  }
}

</mosaic_0001>

<llo_original>
// kernel: tpu_custom_call.1
$region0: #{tpu_custom_call.1}
  #allocation0 [shape = 'u32[]', space=smem, size = 0x4, offset = 0x4, fixed_abs, tag = 'smem constant byte address 0x4 - core index']
  #allocation1 [shape = 'u32[144,128]{1,0:T(1,128)}', space=vmem, size = 0x12000, scoped, tag = 'internal scratch']
  %s0 = inlined_call_operand.hbm [shape: f32[2,256], index: 0, kind: input, shape index: {}]
  %s1 = inlined_call_operand.hbm [shape: f32[1,6400], index: 1, kind: input, shape index: {}]
  %s2 = inlined_call_operand.hbm [shape: f32[2,256], index: 2, kind: output, shape index: {}]
  %s3 = sld [smem:[#allocation0]]
  $region26: #{tpu_custom_call.1} parent=0
    _
  %s5 = ssub.s32 1, %s3
  %s6 = scalar_select 0, %s5, %s3
  $region1: #{tpu_custom_call.1} parent=0
    #allocation2 [shape = 'u8[2048]{0}', space=vmem, size = 0x800, scoped, tag = 'input window, operand 0, single buffered']
    #allocation3 [shape = 's32[1]{0}', space=sflag, size = 0x4, scoped, tag = 'scoped memory for tpu_custom_call.1']
    #allocation4 [shape = 's32[1]{0}', space=sflag, size = 0x4, scoped, tag = 'scoped memory for tpu_custom_call.1']
    #allocation5 [shape = 'u8[1024]{0}', space=vmem, size = 0x400, scoped, tag = 'input window, operand 1, single buffered']
    #allocation6 [shape = 's32[1]{0}', space=sflag, size = 0x4, scoped, tag = 'scoped memory for tpu_custom_call.1']
    #allocation7 [shape = 'u8[2048]{0}', space=vmem, size = 0x800, scoped, tag = 'output window, operand 0, single buffered']
    %7 = vsyncpa [#allocation3], 0
    %8 = vsyncpa [#allocation6], 0
    %9 = vsyncpa [#allocation4], 0
    // Predicated region
    $region2: #{tpu_custom_call.1} parent=1 // pred_check
      _
    $region3: #{tpu_custom_call.1} parent=1 // pred_check_branch
      %11 = sbr.rel (0) target = $region5
    $region4: #{tpu_custom_call.1} parent=1 // pred_region
      %s13 = ssub.s32 64, 64
      %14 = vsyncadd [#allocation3], %s13
      %s16 = sshll.u32 [#allocation2], 4
      %s17 = int_to_ptr.vmem [resolvable:$true] %s16
      %19 = dma.hbm_to_vmem [thread:$0]  %s0, 64, %s17, [#allocation3]
    $region5: #{tpu_custom_call.1} parent=1 // pred_fallthru
      _
    // Predicated region
    $region6: #{tpu_custom_call.1} parent=1 // pred_check
      _
    $region7: #{tpu_custom_call.1} parent=1 // pred_check_branch
      %21 = sbr.rel (0) target = $region9
    $region8: #{tpu_custom_call.1} parent=1 // pred_region
      %s23 = ssub.s32 32, 32
      %24 = vsyncadd [#allocation6], %s23
      %s26 = sshll.u32 [#allocation5], 4
      %s27 = int_to_ptr.vmem [resolvable:$true] %s26
      %29 = dma.hbm_to_vmem [thread:$0]  %s1, 32, %s27, [#allocation6]
    $region9: #{tpu_custom_call.1} parent=1 // pred_fallthru
      _
    // Predicated region
    $region10: #{tpu_custom_call.1} parent=1 // pred_check
      _
    $region11: #{tpu_custom_call.1} parent=1 // pred_check_branch
      %31 = sbr.rel (0) target = $region13
    $region12: #{tpu_custom_call.1} parent=1 // pred_region
      %32 = dma.done [#allocation3], 64
    $region13: #{tpu_custom_call.1} parent=1 // pred_fallthru
      _
    // Predicated region
    $region14: #{tpu_custom_call.1} parent=1 // pred_check
      _
    $region15: #{tpu_custom_call.1} parent=1 // pred_check_branch
      %34 = sbr.rel (0) target = $region17
    $region16: #{tpu_custom_call.1} parent=1 // pred_region
      %35 = dma.done [#allocation6], 32
    $region17: #{tpu_custom_call.1} parent=1 // pred_fallthru
      _
    %v36 = vld [vmem:[#allocation2] sm:$0xf]
    %v37 = vld [vmem:[#allocation5] sm:$0x3]
    %v39 = vlaneseq
    %v40 = vshrl.u32 %v39, 7
    %v41 = vsub.s32 0, %v40
    %v42 = vrot.slane %v37, %v41
    %v43 = vlaneseq
    %v44 = vshrl.u32 %v43, 7
    %v45 = vsub.s32 1, %v44
    %v46 = vrot.slane %v37, %v45
    %v47 = vcombine.low %v42, %v46
    %v49 = vunpack.c.l.s4 1983009808
    %v50 = vunpack.c.0.s8 %v49
    %v51 = vlaneseq
    %v52 = vshrl.u32 %v51, 7
    %v53 = vsub.s32 %v50, %v52
    %v54 = vrot.slane %v47, %v53
    %v56 = vadd.f32 %v36, %v54
    %57 = vst [vmem:[#allocation7] sm:$0xf] %v56
    // Predicated region
    $region18: #{tpu_custom_call.1} parent=1 // pred_check
      _
    $region19: #{tpu_custom_call.1} parent=1 // pred_check_branch
      %59 = sbr.rel (0) target = $region21
    $region20: #{tpu_custom_call.1} parent=1 // pred_region
      %s61 = ssub.s32 64, 64
      %62 = vsyncadd [#allocation4], %s61
      %s64 = sshll.u32 [#allocation7], 4
      %s65 = int_to_ptr.vmem [resolvable:$true] %s64
      %67 = dma.vmem_to_hbm [thread:$0]  %s65, 64, %s2, [#allocation4]
    $region21: #{tpu_custom_call.1} parent=1 // pred_fallthru
      _
    // Predicated region
    $region22: #{tpu_custom_call.1} parent=1 // pred_check
      _
    $region23: #{tpu_custom_call.1} parent=1 // pred_check_branch
      %69 = sbr.rel (0) target = $region25
    $region24: #{tpu_custom_call.1} parent=1 // pred_region
      %70 = dma.done [#allocation4], 64
    $region25: #{tpu_custom_call.1} parent=1 // pred_fallthru
      _
    %71 = vsyncpa [#allocation3], 1
    %72 = vsyncpa [#allocation6], 1
    %73 = vsyncpa [#allocation4], 1

</llo_original>
